<compile_context>
chip_gen: v7x
topology: tpu7x:2x2x1
jax: 0.10.0
libtpu: 0.0.40
codegen_flags: <defaults>
</compile_context>

<pallas_src>
import jax
import jax.numpy as jnp
from jax.experimental import pallas as pl
from jax.experimental.pallas import tpu as pltpu


def _round_up(v: int, m: int) -> int:
    return (v + m - 1) // m * m


def _cdiv(a: int, b: int) -> int:
    return (a + b - 1) // b


def _vmem_capacity_bytes() -> int:
    """Physical VMEM per TensorCore; conservative fallback if query fails."""
    try:
        cap = int(pltpu.get_tpu_info().vmem_capacity_bytes)
        if cap > 0:
            return cap
    except Exception:
        pass
    return 64 * 1024 * 1024  # v7x per-TC (smallest of the supported gens)


def hypernet_kernel(x_ref, w1_ref, b1_ref, w2_ref, b2_ref, w3_ref, b3_ref, o_ref):
    # Layers 1-2 are tiny; recompute per P-tile (keeps the grid axis "parallel"
    # so it can be sharded across TensorCores). Dropout = identity (eval mode).
    h1 = jnp.dot(x_ref[...], w1_ref[...], preferred_element_type=jnp.float32)
    h1 = jnp.maximum(h1 + b1_ref[...], 0.0)

    h2 = jnp.dot(h1.astype(w2_ref.dtype), w2_ref[...],
                 preferred_element_type=jnp.float32)
    h2 = jnp.maximum(h2 + b2_ref[...], 0.0)

    # Only this dot touches the streamed (H2, TN) tile of w3.
    out = jnp.dot(h2.astype(w3_ref.dtype), w3_ref[...],
                  preferred_element_type=jnp.float32)
    o_ref[...] = (out + b3_ref[...]).astype(o_ref.dtype)


def prepare_hypernetwork_params(params, *, compute_dtype=jnp.bfloat16,
                                target_tile_n=16384, max_batch=8,
                                w3_buffer_count=3):
    """One-time preprocessing (hoisted out of the per-call hot path).

    Casts weights to `compute_dtype` (bf16 by default; float32 for an exact
    fallback), pads w3/b3 once to the tiled P extent, and records the tiling
    decision. `max_batch` is only used for the VMEM budget when sizing tiles.
    On v6e/v5e (128 MiB VMEM) `target_tile_n` may be raised to 32768.
    """
    compute_dtype = jnp.dtype(compute_dtype)
    w1 = jnp.asarray(params["w1"], compute_dtype)
    w2 = jnp.asarray(params["w2"], compute_dtype)
    w3 = jnp.asarray(params["w3"], compute_dtype)
    b1 = jnp.asarray(params["b1"], jnp.float32).reshape(1, -1)
    b2 = jnp.asarray(params["b2"], jnp.float32).reshape(1, -1)
    b3 = jnp.asarray(params["b3"], jnp.float32).reshape(1, -1)

    C, H1 = w1.shape
    H2 = w2.shape[1]
    P = w3.shape[1]
    wbytes = compute_dtype.itemsize
    B_nom = max(_round_up(max_batch, 8), 8)
    n_buf = max(int(w3_buffer_count), 2)

    # --- VMEM budget -> max lane-width of the streamed tiles.
    budget = int(_vmem_capacity_bytes() * 0.65)          # headroom for scratch
    resident = (2 * (B_nom * C + C * H1 + H1 * H2) * wbytes
                + 2 * (H1 + H2) * 4 + B_nom * (H1 + H2) * 4)
    per_col = (n_buf * H2 * wbytes        # streamed w3 buffers
               + 2 * B_nom * 4            # output tile (f32 worst case), 2x
               + B_nom * 4                # f32 accumulator
               + 2 * 4)                   # b3 tile
    tn_max = max((budget - resident) // per_col, 128)
    tn_max = (tn_max // 128) * 128
    tn_target = max(128, min(_round_up(target_tile_n, 128), tn_max))

    # --- Choose TN: prefer an exact divisor tiling (P_pad == round_up(P,128),
    # so no output slice when P % 128 == 0) and n_tiles >= 2 (v7x megacore).
    P128 = _round_up(P, 128)
    tiles = P128 // 128
    target_tiles = max(tn_target // 128, 1)
    divisors = [d for d in range(1, tiles + 1) if tiles % d == 0]
    feas = [d for d in divisors if d <= target_tiles]
    feas2 = [d for d in feas if tiles // d >= 2]
    d = max(feas2) if feas2 else max(feas)
    if tiles >= 2 and d * 4 < min(target_tiles, tiles):
        # Exact tiling would be far too fine-grained (e.g. prime tiles):
        # accept a little one-time padding instead.
        n_tiles = max(2, _cdiv(tiles, target_tiles))
        TN = _cdiv(tiles, n_tiles) * 128
    else:
        TN = d * 128
        n_tiles = tiles // d
    P_pad = n_tiles * TN

    if P_pad != P:  # one-time pad, NOT per call
        w3 = jnp.pad(w3, ((0, 0), (0, P_pad - P)))
        b3 = jnp.pad(b3, ((0, 0), (0, P_pad - P)))

    return {
        "w1": w1, "b1": b1, "w2": w2, "b2": b2, "w3": w3, "b3": b3,
        "meta": {"P": int(P), "P_pad": int(P_pad), "TN": int(TN),
                 "n_tiles": int(n_tiles), "compute_dtype": compute_dtype,
                 "w3_buffer_count": n_buf},
    }


def hypernetwork_forward(context, prepared, *, out_dtype=jnp.float32):
    """Fused 3-layer MLP forward in a single Pallas call, tiled over P.

    context:  (B, context_size) float32
    prepared: output of `prepare_hypernetwork_params` (cast/padded once).
    out_dtype: float32 (default) or bfloat16 to halve output writeback bytes.
    """
    meta = prepared["meta"]
    w1, b1 = prepared["w1"], prepared["b1"]
    w2, b2 = prepared["w2"], prepared["b2"]
    w3, b3 = prepared["w3"], prepared["b3"]
    compute_dtype = meta["compute_dtype"]
    TN, n_tiles = meta["TN"], meta["n_tiles"]
    P, P_pad = meta["P"], meta["P_pad"]

    C, H1 = w1.shape
    H2 = w2.shape[1]
    B = context.shape[0]

    # Batch padding: fill the 8-row sublane so vregs/MXU rows aren't wasted.
    # TODO(synk): very large batches would want an additional batch grid axis.
    B_pad = max(_round_up(B, 8), 8)
    x = context.astype(compute_dtype)
    if B_pad != B:
        x = jnp.pad(x, ((0, B_pad - B), (0, 0)))

    wbytes = jnp.dtype(compute_dtype).itemsize
    obytes = jnp.dtype(out_dtype).itemsize
    n_buf = meta["w3_buffer_count"] if n_tiles >= meta["w3_buffer_count"] else 2

    # VMEM requirement; the limit is never clamped below it.
    vmem_need = (n_buf * H2 * TN * wbytes            # streamed w3 buffers
                 + 2 * TN * 4                        # b3 tile
                 + 2 * B_pad * TN * obytes           # out tile (double-buffered)
                 + B_pad * TN * 4                    # f32 accumulator
                 + 2 * (B_pad * C + C * H1 + H1 * H2) * wbytes
                 + 2 * (H1 + H2) * 4
                 + B_pad * (H1 + H2) * 4)            # h1/h2 intermediates
    vmem_cap = _vmem_capacity_bytes()
    vmem_limit = max(int(vmem_need * 1.25) + (4 << 20), 16 << 20)
    vmem_limit = min(vmem_limit, vmem_cap)
    vmem_limit = max(vmem_limit, int(vmem_need))

    flops = 2 * B_pad * (C * H1 + H1 * H2) * n_tiles + 2 * B_pad * H2 * P_pad
    bytes_accessed = (H2 * P_pad * wbytes + B_pad * P_pad * obytes
                      + (B_pad * C + C * H1 + H1 * H2) * wbytes
                      + (H1 + H2 + P_pad) * 4)

    def resident(a):
        return pl.BlockSpec(a.shape, lambda j: (0, 0))

    def run(w3_spec):
        return pl.pallas_call(
            hypernet_kernel,
            out_shape=jax.ShapeDtypeStruct((B_pad, P_pad), out_dtype),
            grid=(n_tiles,),
            in_specs=[
                resident(x),                               # x  (B_pad, C)
                resident(w1),                              # w1 (C, H1)
                resident(b1),                              # b1 (1, H1)
                resident(w2),                              # w2 (H1, H2)
                resident(b2),                              # b2 (1, H2)
                w3_spec,                                   # w3 tile (streamed)
                pl.BlockSpec((1, TN), lambda j: (0, j)),   # b3 tile
            ],
            out_specs=pl.BlockSpec((B_pad, TN), lambda j: (0, j)),
            compiler_params=pltpu.CompilerParams(
                dimension_semantics=("parallel",),         # v7x: 2 TCs share P
                vmem_limit_bytes=int(vmem_limit)),
            cost_estimate=pl.CostEstimate(flops=int(flops),
                                          transcendentals=0,
                                          bytes_accessed=int(bytes_accessed)),
        )(x, w1, b1, w2, b2, w3, b3)

    out = None
    if n_buf > 2:
        # Deeper buffering on the streamed w3: keeps the next DMA in flight
        # through the per-step bubble (biggest relative win on v7x).
        try:
            out = run(pl.BlockSpec((H2, TN), lambda j: (0, j),
                                   pipeline_mode=pl.Buffered(n_buf)))
        except Exception:
            out = None
    if out is None:
        out = run(pl.BlockSpec((H2, TN), lambda j: (0, j)))

    if B_pad != B or P_pad != P:
        out = out[:B, :P]   # no-op (no copy) when B%8==0 and P%128==0
    return out


def init_hypernetwork_params(key, context_size, target_param_count,
                             hidden_sizes=(128, 256)):
    """Matches the PyTorch init:
       hidden Linear layers: weight ~ N(0, 0.05), bias = 0
       final Linear layer:   weight ~ N(0, 0.3),  bias = 2.0
    Weights are stored as (in, out) = PyTorch (out, in) transposed."""
    h1, h2 = hidden_sizes
    k1, k2, k3 = jax.random.split(key, 3)
    return {
        "w1": 0.05 * jax.random.normal(k1, (context_size, h1), jnp.float32),
        "b1": jnp.zeros((1, h1), jnp.float32),
        "w2": 0.05 * jax.random.normal(k2, (h1, h2), jnp.float32),
        "b2": jnp.zeros((1, h2), jnp.float32),
        "w3": 0.3 * jax.random.normal(k3, (h2, target_param_count), jnp.float32),
        "b3": jnp.full((1, target_param_count), 2.0, jnp.float32),
    }


def hypernetwork_ref(context, params, compute_dtype=jnp.bfloat16):
    """Pure-JAX reference mirroring the kernel's mixed precision
    (compute_dtype operands, f32 accumulation, f32 bias adds)."""
    cd = jnp.dtype(compute_dtype)
    x = context.astype(cd)
    h = jnp.dot(x, params["w1"].astype(cd),
                preferred_element_type=jnp.float32) + params["b1"]
    h = jnp.maximum(h, 0.0)
    h = jnp.dot(h.astype(cd), params["w2"].astype(cd),
                preferred_element_type=jnp.float32) + params["b2"]
    h = jnp.maximum(h, 0.0)
    return jnp.dot(h.astype(cd), params["w3"].astype(cd),
                   preferred_element_type=jnp.float32) + params["b3"]


if __name__ == "__main__":
    key = jax.random.PRNGKey(0)

    # --- Case 1: small shapes (wrapper pads B->8 rows, P->128 lanes) ---------
    k_params, k_x, key = (*jax.random.split(key, 2), key)
    params = init_hypernetwork_params(k_params, context_size=32,
                                      target_param_count=64)
    context = jax.random.normal(k_x, (2, 32), jnp.float32)
    prepared = prepare_hypernetwork_params(params)          # one-time cast+pad
    out = jax.block_until_ready(hypernetwork_forward(context, prepared))
    ref = hypernetwork_ref(context, params)
    assert out.shape == (2, 64)
    assert jnp.allclose(out, ref, atol=2e-3, rtol=2e-3), "case1 mismatch"

    # --- Case 2: multi-tile P (exercises streamed w3 + Buffered path) --------
    k_params2, k_x2 = jax.random.split(jax.random.PRNGKey(1))
    params2 = init_hypernetwork_params(k_params2, context_size=32,
                                       target_param_count=2048)
    context2 = jax.random.normal(k_x2, (4, 32), jnp.float32)
    prepared2 = prepare_hypernetwork_params(params2, target_tile_n=512)
    out2 = jax.block_until_ready(hypernetwork_forward(context2, prepared2))
    ref2 = hypernetwork_ref(context2, params2)
    assert out2.shape == (4, 2048)
    assert jnp.allclose(out2, ref2, atol=2e-3, rtol=2e-3), "case2 mismatch"

    # --- Case 3: float32 fallback, no output padding/slice at all ------------
    k_params3, k_x3 = jax.random.split(jax.random.PRNGKey(2))
    params3 = init_hypernetwork_params(k_params3, context_size=16,
                                       target_param_count=384)
    context3 = jax.random.normal(k_x3, (8, 16), jnp.float32)
    prepared3 = prepare_hypernetwork_params(params3, compute_dtype=jnp.float32,
                                            target_tile_n=512)
    out3 = jax.block_until_ready(hypernetwork_forward(context3, prepared3))
    ref3 = hypernetwork_ref(context3, params3, compute_dtype=jnp.float32)
    assert out3.shape == (8, 384)
    assert jnp.allclose(out3, ref3, atol=2e-3, rtol=2e-3), "case3 mismatch"

    # TODO(synk): training-mode Dropout(0.1) (stateful RNG masking) is not
    # implemented; eval-mode (identity) semantics are reproduced.
    print("KERNEL_OK")
</pallas_src>

<mosaic_0001>
module attributes {stable_mosaic.version = 11 : i64} {
  func.func @hypernet_kernel(%arg0: i32, %arg1: memref<8x32xbf16, #tpu.memory_space<vmem>>, %arg2: memref<32x128xbf16, #tpu.memory_space<vmem>>, %arg3: memref<1x128xf32, #tpu.memory_space<vmem>>, %arg4: memref<128x256xbf16, #tpu.memory_space<vmem>>, %arg5: memref<1x256xf32, #tpu.memory_space<vmem>>, %arg6: memref<256x128xbf16, #tpu.memory_space<vmem>>, %arg7: memref<1x128xf32, #tpu.memory_space<vmem>>, %arg8: memref<8x128xf32, #tpu.memory_space<vmem>>) attributes {dimension_semantics = [#tpu.dimension_semantics<parallel>], iteration_bounds = array<i64: 1>, scalar_prefetch = 0 : i64, scratch_operands = 0 : i64, tpu.core_type = #tpu.core_type<tc>, window_params = [{pipeline_mode = #tpu.pipeline_mode<synchronous>, transform_indices = @transform_0, window_bounds = array<i64: 8, 32>}, {pipeline_mode = #tpu.pipeline_mode<synchronous>, transform_indices = @transform_1, window_bounds = array<i64: 32, 128>}, {pipeline_mode = #tpu.pipeline_mode<synchronous>, transform_indices = @transform_2, window_bounds = array<i64: 1, 128>}, {pipeline_mode = #tpu.pipeline_mode<synchronous>, transform_indices = @transform_3, window_bounds = array<i64: 128, 256>}, {pipeline_mode = #tpu.pipeline_mode<synchronous>, transform_indices = @transform_4, window_bounds = array<i64: 1, 256>}, {transform_indices = @transform_5, window_bounds = array<i64: 256, 128>}, {transform_indices = @transform_6, window_bounds = array<i64: 1, 128>}, {transform_indices = @transform_7, window_bounds = array<i64: 8, 128>}]} {
    %c0 = arith.constant 0 : index
    %c0_0 = arith.constant 0 : index
    %0 = vector.load %arg1[%c0, %c0_0] : memref<8x32xbf16, #tpu.memory_space<vmem>>, vector<8x32xbf16>
    %c0_1 = arith.constant 0 : index
    %c0_2 = arith.constant 0 : index
    %1 = vector.load %arg2[%c0_1, %c0_2] : memref<32x128xbf16, #tpu.memory_space<vmem>>, vector<32x128xbf16>
    %cst = arith.constant dense<0.000000e+00> : vector<8x128xf32>
    %2 = tpu.matmul %0, %1, %cst {dimension_numbers = #tpu.dot_dimension_numbers<[1], [0], [0], [1], [0, 0, 1, 1], [], []>} : vector<8x32xbf16>, vector<32x128xbf16>, vector<8x128xf32> -> vector<8x128xf32>
    %c0_3 = arith.constant 0 : index
    %c0_4 = arith.constant 0 : index
    %3 = vector.load %arg3[%c0_3, %c0_4] : memref<1x128xf32, #tpu.memory_space<vmem>>, vector<1x128xf32>
    %4 = vector.broadcast %3 : vector<1x128xf32> to vector<8x128xf32>
    %5 = arith.addf %2, %4 : vector<8x128xf32>
    %cst_5 = arith.constant 0.000000e+00 : f32
    %6 = vector.broadcast %cst_5 : f32 to vector<8x128xf32>
    %7 = arith.maximumf %5, %6 : vector<8x128xf32>
    %8 = arith.truncf %7 : vector<8x128xf32> to vector<8x128xbf16>
    %c0_6 = arith.constant 0 : index
    %c0_7 = arith.constant 0 : index
    %9 = vector.load %arg4[%c0_6, %c0_7] : memref<128x256xbf16, #tpu.memory_space<vmem>>, vector<128x256xbf16>
    %cst_8 = arith.constant dense<0.000000e+00> : vector<8x256xf32>
    %10 = tpu.matmul %8, %9, %cst_8 {dimension_numbers = #tpu.dot_dimension_numbers<[1], [0], [0], [1], [0, 0, 1, 1], [], []>} : vector<8x128xbf16>, vector<128x256xbf16>, vector<8x256xf32> -> vector<8x256xf32>
    %c0_9 = arith.constant 0 : index
    %c0_10 = arith.constant 0 : index
    %11 = vector.load %arg5[%c0_9, %c0_10] : memref<1x256xf32, #tpu.memory_space<vmem>>, vector<1x256xf32>
    %12 = vector.broadcast %11 : vector<1x256xf32> to vector<8x256xf32>
    %13 = arith.addf %10, %12 : vector<8x256xf32>
    %cst_11 = arith.constant 0.000000e+00 : f32
    %14 = vector.broadcast %cst_11 : f32 to vector<8x256xf32>
    %15 = arith.maximumf %13, %14 : vector<8x256xf32>
    %16 = arith.truncf %15 : vector<8x256xf32> to vector<8x256xbf16>
    %c0_12 = arith.constant 0 : index
    %c0_13 = arith.constant 0 : index
    %17 = vector.load %arg6[%c0_12, %c0_13] : memref<256x128xbf16, #tpu.memory_space<vmem>>, vector<256x128xbf16>
    %cst_14 = arith.constant dense<0.000000e+00> : vector<8x128xf32>
    %18 = tpu.matmul %16, %17, %cst_14 {dimension_numbers = #tpu.dot_dimension_numbers<[1], [0], [0], [1], [0, 0, 1, 1], [], []>} : vector<8x256xbf16>, vector<256x128xbf16>, vector<8x128xf32> -> vector<8x128xf32>
    %c0_15 = arith.constant 0 : index
    %c0_16 = arith.constant 0 : index
    %19 = vector.load %arg7[%c0_15, %c0_16] : memref<1x128xf32, #tpu.memory_space<vmem>>, vector<1x128xf32>
    %20 = vector.broadcast %19 : vector<1x128xf32> to vector<8x128xf32>
    %21 = arith.addf %18, %20 : vector<8x128xf32>
    %c0_17 = arith.constant 0 : index
    %c0_18 = arith.constant 0 : index
    %22 = vector.load %arg8[%c0_17, %c0_18] : memref<8x128xf32, #tpu.memory_space<vmem>>, vector<8x128xf32>
    tpu.vector_store %arg8[%c0_17, %c0_18], %21 {strides = array<i32>} : memref<8x128xf32, #tpu.memory_space<vmem>>, vector<8x128xf32>,
    return
  }
  func.func @transform_0(%arg0: i32) -> (i32, i32) {
    %c0_i32 = arith.constant 0 : i32
    %c0_i32_0 = arith.constant 0 : i32
    %c0_i32_1 = arith.constant 0 : i32
    return %c0_i32, %c0_i32_0 : i32, i32
  }
  func.func @transform_1(%arg0: i32) -> (i32, i32) {
    %c0_i32 = arith.constant 0 : i32
    %c0_i32_0 = arith.constant 0 : i32
    %c0_i32_1 = arith.constant 0 : i32
    return %c0_i32, %c0_i32_0 : i32, i32
  }
  func.func @transform_2(%arg0: i32) -> (i32, i32) {
    %c0_i32 = arith.constant 0 : i32
    %c0_i32_0 = arith.constant 0 : i32
    %c0_i32_1 = arith.constant 0 : i32
    return %c0_i32, %c0_i32_0 : i32, i32
  }
  func.func @transform_3(%arg0: i32) -> (i32, i32) {
    %c0_i32 = arith.constant 0 : i32
    %c0_i32_0 = arith.constant 0 : i32
    %c0_i32_1 = arith.constant 0 : i32
    return %c0_i32, %c0_i32_0 : i32, i32
  }
  func.func @transform_4(%arg0: i32) -> (i32, i32) {
    %c0_i32 = arith.constant 0 : i32
    %c0_i32_0 = arith.constant 0 : i32
    %c0_i32_1 = arith.constant 0 : i32
    return %c0_i32, %c0_i32_0 : i32, i32
  }
  func.func @transform_5(%arg0: i32) -> (i32, i32) {
    %c0_i32 = arith.constant 0 : i32
    %c0_i32_0 = arith.constant 0 : i32
    return %c0_i32, %arg0 : i32, i32
  }
  func.func @transform_6(%arg0: i32) -> (i32, i32) {
    %c0_i32 = arith.constant 0 : i32
    %c0_i32_0 = arith.constant 0 : i32
    return %c0_i32, %arg0 : i32, i32
  }
  func.func @transform_7(%arg0: i32) -> (i32, i32) {
    %c0_i32 = arith.constant 0 : i32
    %c0_i32_0 = arith.constant 0 : i32
    return %c0_i32, %arg0 : i32, i32
  }
}

</mosaic_0001>

<llo_original>
// kernel: tpu_custom_call.1
$region0: #{tpu_custom_call.1}
  #allocation0 [shape = 'u32[]', space=smem, size = 0x4, offset = 0x4, fixed_abs, tag = 'smem constant byte address 0x4 - core index']
  #allocation1 [shape = 'u32[144,128]{1,0:T(1,128)}', space=vmem, size = 0x12000, scoped, tag = 'internal scratch']
  %s0 = inlined_call_operand.hbm [shape: bf16[8,32], index: 0, kind: input, shape index: {}]
  %s1 = inlined_call_operand.hbm [shape: bf16[32,128], index: 1, kind: input, shape index: {}]
  %s2 = inlined_call_operand.vmem [shape: f32[1,128], index: 2, kind: input, shape index: {}]
  %s3 = inlined_call_operand.hbm [shape: bf16[128,256], index: 3, kind: input, shape index: {}]
  %s4 = inlined_call_operand.vmem [shape: f32[1,256], index: 4, kind: input, shape index: {}]
  %s5 = inlined_call_operand.hbm [shape: bf16[256,128], index: 5, kind: input, shape index: {}]
  %s6 = inlined_call_operand.vmem [shape: f32[1,128], index: 6, kind: input, shape index: {}]
  %s7 = inlined_call_operand.hbm [shape: f32[8,128], index: 7, kind: output, shape index: {}]
  %s8 = sld [smem:[#allocation0]]
  $region54: #{tpu_custom_call.1} parent=0
    _
  %s10 = ssub.s32 1, %s8
  %s11 = scalar_select 0, %s10, %s8
  $region1: #{tpu_custom_call.1} parent=0
    #allocation2 [shape = 'u8[2048]{0}', space=vmem, size = 0x800, scoped, tag = 'input window, operand 0, single buffered']
    #allocation3 [shape = 's32[1]{0}', space=sflag, size = 0x4, scoped, tag = 'scoped memory for tpu_custom_call.1']
    #allocation4 [shape = 's32[1]{0}', space=sflag, size = 0x4, scoped, tag = 'scoped memory for tpu_custom_call.1']
    #allocation5 [shape = 'u8[8192]{0}', space=vmem, size = 0x2000, scoped, tag = 'input window, operand 1, single buffered']
    #allocation6 [shape = 's32[1]{0}', space=sflag, size = 0x4, scoped, tag = 'scoped memory for tpu_custom_call.1']
    #allocation7 [shape = 'u8[65536]{0}', space=vmem, size = 0x10000, scoped, tag = 'input window, operand 3, single buffered']
    #allocation8 [shape = 'u8[65536]{0}', space=vmem, size = 0x10000, scoped, tag = 'input window, operand 5, single buffered']
    #allocation9 [shape = 's32[1]{0}', space=sflag, size = 0x4, scoped, tag = 'scoped memory for tpu_custom_call.1']
    #allocation10 [shape = 'u8[4096]{0}', space=vmem, size = 0x1000, scoped, tag = 'output window, operand 0, single buffered']
    %12 = vsyncpa [#allocation3], 0
    %13 = vsyncpa [#allocation6], 0
    %14 = vsyncpa [#allocation9], 0
    %15 = vsyncpa [#allocation4], 0
    // Predicated region
    $region2: #{tpu_custom_call.1} parent=1 // pred_check
      _
    $region3: #{tpu_custom_call.1} parent=1 // pred_check_branch
      %17 = sbr.rel (0) target = $region5
    $region4: #{tpu_custom_call.1} parent=1 // pred_region
      %s19 = ssub.s32 64, 64
      %20 = vsyncadd [#allocation3], %s19
      %s22 = sshll.u32 [#allocation2], 4
      %s23 = int_to_ptr.vmem [resolvable:$true] %s22
      %25 = dma.hbm_to_vmem [thread:$0]  %s0, 64, %s23, [#allocation3]
    $region5: #{tpu_custom_call.1} parent=1 // pred_fallthru
      _
    // Predicated region
    $region6: #{tpu_custom_call.1} parent=1 // pred_check
      _
    $region7: #{tpu_custom_call.1} parent=1 // pred_check_branch
      %27 = sbr.rel (0) target = $region9
    $region8: #{tpu_custom_call.1} parent=1 // pred_region
      %s29 = ssub.s32 256, 256
      %30 = vsyncadd [#allocation6], %s29
      %s31 = sshll.u32 [#allocation5], 4
      %s32 = int_to_ptr.vmem [resolvable:$true] %s31
      %37 = dma.hbm_to_vmem [thread:$0]  %s1, 256, %s32, [#allocation6], 64, 64, 4
    $region9: #{tpu_custom_call.1} parent=1 // pred_fallthru
      _
    // Predicated region
    $region10: #{tpu_custom_call.1} parent=1 // pred_check
      _
    $region11: #{tpu_custom_call.1} parent=1 // pred_check_branch
      %39 = sbr.rel (0) target = $region13
    $region12: #{tpu_custom_call.1} parent=1 // pred_region
      _
    $region13: #{tpu_custom_call.1} parent=1 // pred_fallthru
      _
    // Predicated region
    $region14: #{tpu_custom_call.1} parent=1 // pred_check
      _
    $region15: #{tpu_custom_call.1} parent=1 // pred_check_branch
      %41 = sbr.rel (0) target = $region17
    $region16: #{tpu_custom_call.1} parent=1 // pred_region
      %s43 = ssub.s32 2048, 2048
      %44 = vsyncadd [#allocation6], %s43
      %s45 = sshll.u32 [#allocation7], 4
      %s46 = int_to_ptr.vmem [resolvable:$true] %s45
      %51 = dma.hbm_to_vmem [thread:$0]  %s3, 2048, %s46, [#allocation6], 128, 128, 8
    $region17: #{tpu_custom_call.1} parent=1 // pred_fallthru
      _
    // Predicated region
    $region18: #{tpu_custom_call.1} parent=1 // pred_check
      _
    $region19: #{tpu_custom_call.1} parent=1 // pred_check_branch
      %53 = sbr.rel (0) target = $region21
    $region20: #{tpu_custom_call.1} parent=1 // pred_region
      _
    $region21: #{tpu_custom_call.1} parent=1 // pred_fallthru
      _
    // Predicated region
    $region22: #{tpu_custom_call.1} parent=1 // pred_check
      _
    $region23: #{tpu_custom_call.1} parent=1 // pred_check_branch
      %55 = sbr.rel (0) target = $region25
    $region24: #{tpu_custom_call.1} parent=1 // pred_region
      %s57 = ssub.s32 2048, 2048
      %58 = vsyncadd [#allocation9], %s57
      %s59 = sshll.u32 [#allocation8], 4
      %s60 = int_to_ptr.vmem [resolvable:$true] %s59
      %65 = dma.hbm_to_vmem [thread:$0]  %s5, 2048, %s60, [#allocation9], 64, 64, 4
    $region25: #{tpu_custom_call.1} parent=1 // pred_fallthru
      _
    // Predicated region
    $region26: #{tpu_custom_call.1} parent=1 // pred_check
      _
    $region27: #{tpu_custom_call.1} parent=1 // pred_check_branch
      %67 = sbr.rel (0) target = $region29
    $region28: #{tpu_custom_call.1} parent=1 // pred_region
      _
    $region29: #{tpu_custom_call.1} parent=1 // pred_fallthru
      _
    // Predicated region
    $region30: #{tpu_custom_call.1} parent=1 // pred_check
      _
    $region31: #{tpu_custom_call.1} parent=1 // pred_check_branch
      %69 = sbr.rel (0) target = $region33
    $region32: #{tpu_custom_call.1} parent=1 // pred_region
      %70 = dma.done [#allocation3], 64
    $region33: #{tpu_custom_call.1} parent=1 // pred_fallthru
      _
    // Predicated region
    $region34: #{tpu_custom_call.1} parent=1 // pred_check
      _
    $region35: #{tpu_custom_call.1} parent=1 // pred_check_branch
      %72 = sbr.rel (0) target = $region37
    $region36: #{tpu_custom_call.1} parent=1 // pred_region
      %73 = dma.done [#allocation6], 256
    $region37: #{tpu_custom_call.1} parent=1 // pred_fallthru
      _
    // Predicated region
    $region38: #{tpu_custom_call.1} parent=1 // pred_check
      _
    $region39: #{tpu_custom_call.1} parent=1 // pred_check_branch
      %75 = sbr.rel (0) target = $region41
    $region40: #{tpu_custom_call.1} parent=1 // pred_region
      %76 = dma.done [#allocation6], 2048
    $region41: #{tpu_custom_call.1} parent=1 // pred_fallthru
      _
    // Predicated region
    $region42: #{tpu_custom_call.1} parent=1 // pred_check
      _
    $region43: #{tpu_custom_call.1} parent=1 // pred_check_branch
      %78 = sbr.rel (0) target = $region45
    $region44: #{tpu_custom_call.1} parent=1 // pred_region
      %79 = dma.done [#allocation9], 2048
    $region45: #{tpu_custom_call.1} parent=1 // pred_fallthru
      _
    %v81 = vld [vmem:[#allocation2] sm:$0xf]
    %v82 = vld [vmem:[#allocation5] sm:$0xf]
    %v83 = vld [vmem:[#allocation5 + $0x4] sm:$0xf]
    %v84 = vld [vmem:[#allocation5 + $0x8] sm:$0xf]
    %v85 = vld [vmem:[#allocation5 + $0xc] sm:$0xf]
    %v86 = vld [vmem:[%s2] sm:$0x1]
    %v88 = vlaneseq
    %v89 = vshrl.u32 %v88, 7
    %v90 = vsub.s32 0, %v89
    %v91 = vrot.slane %v86, %v90
    %v97 = vunpack.c.l.b16 %v82
    %v98 = vunpack.c.l.b16 %v83
    %v99 = vunpack.c.l.b16 %v84
    %v100 = vunpack.c.l.b16 %v85
    %v101 = vpack.c.b16 %v98, %v97
    %v102 = vpack.c.b16 %v100, %v99
    %vm105 = vcmask 261120
    %v107 = vsel %vm105, %v81, 0
    %109 = vmatprep.subr.bf16.mxu0 0
    %110 = vmatpush1.bf16.msra.mxu0 %v101
    %111 = vmatprep.subr.bf16.mxu0 0
    %112 = vmatpush1.bf16.msra.mxu0 %v102
    %113 = vmatprep.subr.bf16.mxu0 0
    %114 = vmatpush1.bf16.msra.mxu0 0
    %115 = vmatprep.subr.bf16.mxu0 0
    %116 = vmatpush1.bf16.msra.mxu0 0
    %117 = vmatprep.subr.bf16.mxu0 0
    %118 = vmatpush1.bf16.msra.mxu0 0
    %119 = vmatprep.subr.bf16.mxu0 0
    %120 = vmatpush1.bf16.msra.mxu0 0
    %121 = vmatprep.subr.bf16.mxu0 0
    %122 = vmatpush1.bf16.msra.mxu0 0
    %123 = vmatprep.subr.bf16.mxu0 0
    %124 = vmatpush1.bf16.msra.mxu0 0
    %125 = vmatprep.subr.bf16.mxu0 0
    %126 = vmatpush1.bf16.msra.mxu0 0
    %127 = vmatprep.subr.bf16.mxu0 0
    %128 = vmatpush1.bf16.msra.mxu0 0
    %129 = vmatprep.subr.bf16.mxu0 0
    %130 = vmatpush1.bf16.msra.mxu0 0
    %131 = vmatprep.subr.bf16.mxu0 0
    %132 = vmatpush1.bf16.msra.mxu0 0
    %133 = vmatprep.subr.bf16.mxu0 0
    %134 = vmatpush1.bf16.msra.mxu0 0
    %135 = vmatprep.subr.bf16.mxu0 0
    %136 = vmatpush1.bf16.msra.mxu0 0
    %137 = vmatprep.subr.bf16.mxu0 0
    %138 = vmatpush1.bf16.msra.mxu0 0
    %139 = vmatprep.subr.bf16.mxu0 0
    %140 = vmatpush1.bf16.msra.mxu0 0
    %141 = vmatprep.mubr.bf16.mxu0 0
    %142 = vmatmul.mubr.bf16.gmra.mrb[0].mxu0 %v107
    %v143 = vpop.f32.mrb[0].mxu0
    %v144 = vadd.f32 %v91, %v143
    %v145 = vpop.f32.mrb[0].mxu0
    %v146 = vpop.f32.mrb[0].mxu0
    %v147 = vpop.f32.mrb[0].mxu0
    %148 = vdwg.mxu0
    %v149 = vmax.f32 %v144, 0.0
    %v150 = vpack.c.bf16 %v149, %v149
    %v151 = vld [vmem:[#allocation7] sm:$0xff]
    %v152 = vld [vmem:[#allocation7 + $0x8] sm:$0xff]
    %v153 = vld [vmem:[#allocation7 + $0x10] sm:$0xff]
    %v154 = vld [vmem:[#allocation7 + $0x18] sm:$0xff]
    %v155 = vld [vmem:[#allocation7 + $0x20] sm:$0xff]
    %v156 = vld [vmem:[#allocation7 + $0x28] sm:$0xff]
    %v157 = vld [vmem:[#allocation7 + $0x30] sm:$0xff]
    %v158 = vld [vmem:[#allocation7 + $0x38] sm:$0xff]
    %v159 = vld [vmem:[#allocation7 + $0x40] sm:$0xff]
    %v160 = vld [vmem:[#allocation7 + $0x48] sm:$0xff]
    %v161 = vld [vmem:[#allocation7 + $0x50] sm:$0xff]
    %v162 = vld [vmem:[#allocation7 + $0x58] sm:$0xff]
    %v163 = vld [vmem:[#allocation7 + $0x60] sm:$0xff]
    %v164 = vld [vmem:[#allocation7 + $0x68] sm:$0xff]
    %v165 = vld [vmem:[#allocation7 + $0x70] sm:$0xff]
    %v166 = vld [vmem:[#allocation7 + $0x78] sm:$0xff]
    %v167 = vld [vmem:[%s4] sm:$0x3]
    %v169 = vlaneseq
    %v170 = vshrl.u32 %v169, 7
    %v171 = vsub.s32 0, %v170
    %v172 = vrot.slane %v167, %v171
    %v173 = vlaneseq
    %v174 = vshrl.u32 %v173, 7
    %v175 = vsub.s32 1, %v174
    %v176 = vrot.slane %v167, %v175
    %v195 = vunpack.c.l.b16 %v151
    %v196 = vunpack.c.h.b16 %v151
    %v197 = vunpack.c.l.b16 %v152
    %v198 = vunpack.c.h.b16 %v152
    %v199 = vunpack.c.l.b16 %v153
    %v200 = vunpack.c.h.b16 %v153
    %v201 = vunpack.c.l.b16 %v154
    %v202 = vunpack.c.h.b16 %v154
    %v203 = vunpack.c.l.b16 %v155
    %v204 = vunpack.c.h.b16 %v155
    %v205 = vunpack.c.l.b16 %v156
    %v206 = vunpack.c.h.b16 %v156
    %v207 = vunpack.c.l.b16 %v157
    %v208 = vunpack.c.h.b16 %v157
    %v209 = vunpack.c.l.b16 %v158
    %v210 = vunpack.c.h.b16 %v158
    %v211 = vunpack.c.l.b16 %v159
    %v212 = vunpack.c.h.b16 %v159
    %v213 = vunpack.c.l.b16 %v160
    %v214 = vunpack.c.h.b16 %v160
    %v215 = vunpack.c.l.b16 %v161
    %v216 = vunpack.c.h.b16 %v161
    %v217 = vunpack.c.l.b16 %v162
    %v218 = vunpack.c.h.b16 %v162
    %v219 = vunpack.c.l.b16 %v163
    %v220 = vunpack.c.h.b16 %v163
    %v221 = vunpack.c.l.b16 %v164
    %v222 = vunpack.c.h.b16 %v164
    %v223 = vunpack.c.l.b16 %v165
    %v224 = vunpack.c.h.b16 %v165
    %v225 = vunpack.c.l.b16 %v166
    %v226 = vunpack.c.h.b16 %v166
    %v227 = vpack.c.b16 %v197, %v195
    %v228 = vpack.c.b16 %v198, %v196
    %v229 = vpack.c.b16 %v201, %v199
    %v230 = vpack.c.b16 %v202, %v200
    %v231 = vpack.c.b16 %v205, %v203
    %v232 = vpack.c.b16 %v206, %v204
    %v233 = vpack.c.b16 %v209, %v207
    %v234 = vpack.c.b16 %v210, %v208
    %v235 = vpack.c.b16 %v213, %v211
    %v236 = vpack.c.b16 %v214, %v212
    %v237 = vpack.c.b16 %v217, %v215
    %v238 = vpack.c.b16 %v218, %v216
    %v239 = vpack.c.b16 %v221, %v219
    %v240 = vpack.c.b16 %v222, %v220
    %v241 = vpack.c.b16 %v225, %v223
    %v242 = vpack.c.b16 %v226, %v224
    %259 = vmatprep.subr.bf16.mxu0 %v228
    %260 = vmatpush1.bf16.msra.mxu0 %v227
    %261 = vmatprep.subr.bf16.mxu0 %v230
    %262 = vmatpush1.bf16.msra.mxu0 %v229
    %263 = vmatprep.subr.bf16.mxu0 %v232
    %264 = vmatpush1.bf16.msra.mxu0 %v231
    %265 = vmatprep.subr.bf16.mxu0 %v234
    %266 = vmatpush1.bf16.msra.mxu0 %v233
    %267 = vmatprep.subr.bf16.mxu0 %v236
    %268 = vmatpush1.bf16.msra.mxu0 %v235
    %269 = vmatprep.subr.bf16.mxu0 %v238
    %270 = vmatpush1.bf16.msra.mxu0 %v237
    %271 = vmatprep.subr.bf16.mxu0 %v240
    %272 = vmatpush1.bf16.msra.mxu0 %v239
    %273 = vmatprep.subr.bf16.mxu0 %v242
    %274 = vmatpush1.bf16.msra.mxu0 %v241
    %275 = vmatprep.subr.bf16.mxu0 0
    %276 = vmatpush1.bf16.msra.mxu0 0
    %277 = vmatprep.subr.bf16.mxu0 0
    %278 = vmatpush1.bf16.msra.mxu0 0
    %279 = vmatprep.subr.bf16.mxu0 0
    %280 = vmatpush1.bf16.msra.mxu0 0
    %281 = vmatprep.subr.bf16.mxu0 0
    %282 = vmatpush1.bf16.msra.mxu0 0
    %283 = vmatprep.subr.bf16.mxu0 0
    %284 = vmatpush1.bf16.msra.mxu0 0
    %285 = vmatprep.subr.bf16.mxu0 0
    %286 = vmatpush1.bf16.msra.mxu0 0
    %287 = vmatprep.subr.bf16.mxu0 0
    %288 = vmatpush1.bf16.msra.mxu0 0
    %289 = vmatprep.subr.bf16.mxu0 0
    %290 = vmatpush1.bf16.msra.mxu0 0
    %291 = vmatprep.mubr.bf16.mxu0 0
    %292 = vmatmul.mubr.bf16.gmra.mrb[0].mxu0 %v150
    %v293 = vpop.f32.mrb[0].mxu0
    %v294 = vadd.f32 %v172, %v293
    %v295 = vpop.f32.mrb[0].mxu0
    %v296 = vadd.f32 %v176, %v295
    %v297 = vpop.f32.mrb[0].mxu0
    %v298 = vpop.f32.mrb[0].mxu0
    %299 = vdwg.mxu0
    %v300 = vmax.f32 %v294, 0.0
    %v301 = vmax.f32 %v296, 0.0
    %v302 = vpack.c.bf16 %v300, %v300
    %v303 = vpack.c.bf16 %v301, %v301
    %v304 = vld [vmem:[#allocation8] sm:$0xf]
    %v305 = vld [vmem:[#allocation8 + $0x4] sm:$0xf]
    %v306 = vld [vmem:[#allocation8 + $0x8] sm:$0xf]
    %v307 = vld [vmem:[#allocation8 + $0xc] sm:$0xf]
    %v308 = vld [vmem:[#allocation8 + $0x10] sm:$0xf]
    %v309 = vld [vmem:[#allocation8 + $0x14] sm:$0xf]
    %v310 = vld [vmem:[#allocation8 + $0x18] sm:$0xf]
    %v311 = vld [vmem:[#allocation8 + $0x1c] sm:$0xf]
    %v312 = vld [vmem:[#allocation8 + $0x20] sm:$0xf]
    %v313 = vld [vmem:[#allocation8 + $0x24] sm:$0xf]
    %v314 = vld [vmem:[#allocation8 + $0x28] sm:$0xf]
    %v315 = vld [vmem:[#allocation8 + $0x2c] sm:$0xf]
    %v316 = vld [vmem:[#allocation8 + $0x30] sm:$0xf]
    %v317 = vld [vmem:[#allocation8 + $0x34] sm:$0xf]
    %v318 = vld [vmem:[#allocation8 + $0x38] sm:$0xf]
    %v319 = vld [vmem:[#allocation8 + $0x3c] sm:$0xf]
    %v320 = vld [vmem:[#allocation8 + $0x40] sm:$0xf]
    %v321 = vld [vmem:[#allocation8 + $0x44] sm:$0xf]
    %v322 = vld [vmem:[#allocation8 + $0x48] sm:$0xf]
    %v323 = vld [vmem:[#allocation8 + $0x4c] sm:$0xf]
    %v324 = vld [vmem:[#allocation8 + $0x50] sm:$0xf]
    %v325 = vld [vmem:[#allocation8 + $0x54] sm:$0xf]
    %v326 = vld [vmem:[#allocation8 + $0x58] sm:$0xf]
    %v327 = vld [vmem:[#allocation8 + $0x5c] sm:$0xf]
    %v328 = vld [vmem:[#allocation8 + $0x60] sm:$0xf]
    %v329 = vld [vmem:[#allocation8 + $0x64] sm:$0xf]
    %v330 = vld [vmem:[#allocation8 + $0x68] sm:$0xf]
    %v331 = vld [vmem:[#allocation8 + $0x6c] sm:$0xf]
    %v332 = vld [vmem:[#allocation8 + $0x70] sm:$0xf]
    %v333 = vld [vmem:[#allocation8 + $0x74] sm:$0xf]
    %v334 = vld [vmem:[#allocation8 + $0x78] sm:$0xf]
    %v335 = vld [vmem:[#allocation8 + $0x7c] sm:$0xf]
    %v336 = vld [vmem:[%s6] sm:$0x1]
    %v338 = vlaneseq
    %v339 = vshrl.u32 %v338, 7
    %v340 = vsub.s32 0, %v339
    %v341 = vrot.slane %v336, %v340
    %v375 = vunpack.c.l.b16 %v304
    %v376 = vunpack.c.l.b16 %v305
    %v377 = vunpack.c.l.b16 %v306
    %v378 = vunpack.c.l.b16 %v307
    %v379 = vunpack.c.l.b16 %v308
    %v380 = vunpack.c.l.b16 %v309
    %v381 = vunpack.c.l.b16 %v310
    %v382 = vunpack.c.l.b16 %v311
    %v383 = vunpack.c.l.b16 %v312
    %v384 = vunpack.c.l.b16 %v313
    %v385 = vunpack.c.l.b16 %v314
    %v386 = vunpack.c.l.b16 %v315
    %v387 = vunpack.c.l.b16 %v316
    %v388 = vunpack.c.l.b16 %v317
    %v389 = vunpack.c.l.b16 %v318
    %v390 = vunpack.c.l.b16 %v319
    %v391 = vunpack.c.l.b16 %v320
    %v392 = vunpack.c.l.b16 %v321
    %v393 = vunpack.c.l.b16 %v322
    %v394 = vunpack.c.l.b16 %v323
    %v395 = vunpack.c.l.b16 %v324
    %v396 = vunpack.c.l.b16 %v325
    %v397 = vunpack.c.l.b16 %v326
    %v398 = vunpack.c.l.b16 %v327
    %v399 = vunpack.c.l.b16 %v328
    %v400 = vunpack.c.l.b16 %v329
    %v401 = vunpack.c.l.b16 %v330
    %v402 = vunpack.c.l.b16 %v331
    %v403 = vunpack.c.l.b16 %v332
    %v404 = vunpack.c.l.b16 %v333
    %v405 = vunpack.c.l.b16 %v334
    %v406 = vunpack.c.l.b16 %v335
    %v407 = vpack.c.b16 %v376, %v375
    %v408 = vpack.c.b16 %v378, %v377
    %v409 = vpack.c.b16 %v380, %v379
    %v410 = vpack.c.b16 %v382, %v381
    %v411 = vpack.c.b16 %v384, %v383
    %v412 = vpack.c.b16 %v386, %v385
    %v413 = vpack.c.b16 %v388, %v387
    %v414 = vpack.c.b16 %v390, %v389
    %v415 = vpack.c.b16 %v392, %v391
    %v416 = vpack.c.b16 %v394, %v393
    %v417 = vpack.c.b16 %v396, %v395
    %v418 = vpack.c.b16 %v398, %v397
    %v419 = vpack.c.b16 %v400, %v399
    %v420 = vpack.c.b16 %v402, %v401
    %v421 = vpack.c.b16 %v404, %v403
    %v422 = vpack.c.b16 %v406, %v405
    %439 = vmatprep.subr.bf16.mxu0 0
    %440 = vmatpush1.bf16.msra.mxu0 %v407
    %441 = vmatprep.subr.bf16.mxu0 0
    %442 = vmatpush1.bf16.msra.mxu0 %v408
    %443 = vmatprep.subr.bf16.mxu0 0
    %444 = vmatpush1.bf16.msra.mxu0 %v409
    %445 = vmatprep.subr.bf16.mxu0 0
    %446 = vmatpush1.bf16.msra.mxu0 %v410
    %447 = vmatprep.subr.bf16.mxu0 0
    %448 = vmatpush1.bf16.msra.mxu0 %v411
    %449 = vmatprep.subr.bf16.mxu0 0
    %450 = vmatpush1.bf16.msra.mxu0 %v412
    %451 = vmatprep.subr.bf16.mxu0 0
    %452 = vmatpush1.bf16.msra.mxu0 %v413
    %453 = vmatprep.subr.bf16.mxu0 0
    %454 = vmatpush1.bf16.msra.mxu0 %v414
    %455 = vmatprep.subr.bf16.mxu0 0
    %456 = vmatpush1.bf16.msra.mxu0 %v415
    %457 = vmatprep.subr.bf16.mxu0 0
    %458 = vmatpush1.bf16.msra.mxu0 %v416
    %459 = vmatprep.subr.bf16.mxu0 0
    %460 = vmatpush1.bf16.msra.mxu0 %v417
    %461 = vmatprep.subr.bf16.mxu0 0
    %462 = vmatpush1.bf16.msra.mxu0 %v418
    %463 = vmatprep.subr.bf16.mxu0 0
    %464 = vmatpush1.bf16.msra.mxu0 %v419
    %465 = vmatprep.subr.bf16.mxu0 0
    %466 = vmatpush1.bf16.msra.mxu0 %v420
    %467 = vmatprep.subr.bf16.mxu0 0
    %468 = vmatpush1.bf16.msra.mxu0 %v421
    %469 = vmatprep.subr.bf16.mxu0 0
    %470 = vmatpush1.bf16.msra.mxu0 %v422
    %471 = vmatprep.mubr.bf16.mxu0 %v303
    %472 = vmatmul.mubr.bf16.gmra.mrb[0].mxu0 %v302
    %v473 = vpop.f32.mrb[0].mxu0
    %v474 = vadd.f32 %v341, %v473
    %v475 = vpop.f32.mrb[0].mxu0
    %v476 = vpop.f32.mrb[0].mxu0
    %v477 = vpop.f32.mrb[0].mxu0
    %478 = vdwg.mxu0
    %479 = vst [vmem:[#allocation10] sm:$0xff] %v474
    // Predicated region
    $region46: #{tpu_custom_call.1} parent=1 // pred_check
      _
    $region47: #{tpu_custom_call.1} parent=1 // pred_check_branch
      %481 = sbr.rel (0) target = $region49
    $region48: #{tpu_custom_call.1} parent=1 // pred_region
      %s483 = ssub.s32 128, 128
      %484 = vsyncadd [#allocation4], %s483
      %s486 = sshll.u32 [#allocation10], 4
      %s487 = int_to_ptr.vmem [resolvable:$true] %s486
      %489 = dma.vmem_to_hbm [thread:$0]  %s487, 128, %s7, [#allocation4]
    $region49: #{tpu_custom_call.1} parent=1 // pred_fallthru
      _
    // Predicated region
    $region50: #{tpu_custom_call.1} parent=1 // pred_check
      _
    $region51: #{tpu_custom_call.1} parent=1 // pred_check_branch
      %491 = sbr.rel (0) target = $region53
    $region52: #{tpu_custom_call.1} parent=1 // pred_region
      %492 = dma.done [#allocation4], 128
    $region53: #{tpu_custom_call.1} parent=1 // pred_fallthru
      _
    %493 = vsyncpa [#allocation3], 1
    %494 = vsyncpa [#allocation6], 1
    %495 = vsyncpa [#allocation9], 1
    %496 = vsyncpa [#allocation4], 1

</llo_original>
